<compile_context>
chip_gen: v7x
topology: tpu7x:2x2x1
jax: 0.10.0
libtpu: 0.0.40
codegen_flags: <defaults>
</compile_context>

<pallas_src>
import jax
import jax.numpy as jnp
from jax.experimental import pallas as pl
from jax.experimental.pallas import tpu as pltpu


# ----------------------------------------------------------------------------
# Pallas kernel: batched Linear energy.
#   locations: (2, N) f32 in VMEM   (row 0 = x, row 1 = y)
#   output:    (1, N) f32 in VMEM   (energy = y, lane-dense)
# ----------------------------------------------------------------------------
def linear_energy_batch_kernel(loc_ref, out_ref):
    loc = loc_ref[...]            # (2, N) full block, single load
    out_ref[...] = loc[1:2, :]    # forward(): return y  (row 1), lane-dense store


def linear_forward_batch(locations: jax.Array) -> jax.Array:
    """Evaluate the Linear energy at N locations with one pallas_call.

    locations: (2, N) float32  ->  returns (1, N) float32 (= locations[1:2, :])
    """
    assert locations.ndim == 2 and locations.shape[0] == 2, locations.shape
    assert locations.dtype == jnp.float32, locations.dtype  # no silent casts
    n = locations.shape[1]
    return pl.pallas_call(
        linear_energy_batch_kernel,
        out_shape=jax.ShapeDtypeStruct((1, n), jnp.float32),
        in_specs=[pl.BlockSpec(memory_space=pltpu.MemorySpace.VMEM)],
        out_specs=pl.BlockSpec(memory_space=pltpu.MemorySpace.VMEM),
    )(locations)


# ----------------------------------------------------------------------------
# Single-point forward: per performance review, no Pallas here — a plain slice
# fuses into the surrounding jit for effectively zero cost.
# ----------------------------------------------------------------------------
def linear_forward(location: jax.Array) -> jax.Array:
    """Pallas-free equivalent of Linear.forward(); returns a scalar (0-d)."""
    assert location.shape == (2,), location.shape
    assert location.dtype == jnp.float32, location.dtype
    return location[1]


def initialise_randomly(random_idx: int):
    """Mirror of Linear.initialise_randomly (deterministic toggle 0/1)."""
    random_idx = (random_idx + 1) % 2
    return jnp.array([float(random_idx), 0.0], dtype=jnp.float32), random_idx


def sample_on_grid(x_space: jax.Array, y_space: jax.Array) -> jax.Array:
    """Equivalent of SimpleEnergy.sample_on_grid, batched through one kernel.

    Returns z with z[j, i] = forward((x_i, y_j)) - min  == y_j - min(y).
    """
    xx, yy = jnp.meshgrid(x_space, y_space)                       # (ny, nx)
    locs = jnp.stack(
        [xx.reshape(-1), yy.reshape(-1)], axis=0
    ).astype(jnp.float32)                                         # (2, ny*nx)
    z = linear_forward_batch(locs)[0].reshape(yy.shape)           # (ny, nx)
    return z - z.min()


if __name__ == "__main__":
    key = jax.random.PRNGKey(0)

    # --- single-point forward (plain JAX path) ---------------------------------
    location = jax.random.normal(key, (2,), dtype=jnp.float32)
    result = jax.block_until_ready(linear_forward(location))
    assert jnp.allclose(result, location[1]), (result, location[1])

    # --- batched Pallas kernel: 128 random locations (lane-dense N) ------------
    locs = jax.random.normal(jax.random.fold_in(key, 1), (2, 128), dtype=jnp.float32)
    batch_out = jax.block_until_ready(linear_forward_batch(locs))
    assert batch_out.shape == (1, 128)
    assert jnp.allclose(batch_out[0], locs[1]), "batched forward mismatch"

    # --- sample_on_grid equivalent (16 x 8 grid -> one 128-point kernel call) --
    x_space = jnp.linspace(-1.0, 1.0, 16, dtype=jnp.float32)
    y_space = jnp.linspace(-2.0, 2.0, 8, dtype=jnp.float32)
    z = jax.block_until_ready(sample_on_grid(x_space, y_space))
    z_ref = jnp.broadcast_to(
        (y_space - y_space.min())[:, None], (y_space.shape[0], x_space.shape[0])
    )
    assert z.shape == (8, 16)
    assert jnp.allclose(z, z_ref, atol=1e-6), "sample_on_grid mismatch"

    # --- deterministic init path ------------------------------------------------
    loc2, idx = initialise_randomly(-1)
    r2 = jax.block_until_ready(linear_forward(loc2))
    assert jnp.allclose(r2, 0.0), r2
    loc3, _ = initialise_randomly(idx)
    assert jnp.allclose(loc3, jnp.array([1.0, 0.0], dtype=jnp.float32))

    # TODO(synk): .item()-based analyse() and in-place Parameter mutation are
    # host-side Python state with no Pallas equivalent; handled outside kernels.
    print("KERNEL_OK")
</pallas_src>

<mosaic_0001>
module attributes {stable_mosaic.version = 11 : i64} {
  func.func @linear_energy_batch_kernel(%arg0: memref<2x128xf32, #tpu.memory_space<vmem>>, %arg1: memref<1x128xf32, #tpu.memory_space<vmem>>) attributes {dimension_semantics = [], scalar_prefetch = 0 : i64, scratch_operands = 0 : i64, tpu.core_type = #tpu.core_type<tc>} {
    %c0 = arith.constant 0 : index
    %c0_0 = arith.constant 0 : index
    %0 = vector.load %arg0[%c0, %c0_0] : memref<2x128xf32, #tpu.memory_space<vmem>>, vector<2x128xf32>
    %1 = vector.extract_strided_slice %0 {offsets = [1, 0], sizes = [1, 128], strides = [1, 1]} : vector<2x128xf32> to vector<1x128xf32>
    %c0_1 = arith.constant 0 : index
    %c0_2 = arith.constant 0 : index
    %2 = vector.load %arg1[%c0_1, %c0_2] : memref<1x128xf32, #tpu.memory_space<vmem>>, vector<1x128xf32>
    tpu.vector_store %arg1[%c0_1, %c0_2], %1 {strides = array<i32>} : memref<1x128xf32, #tpu.memory_space<vmem>>, vector<1x128xf32>,
    return
  }
}

</mosaic_0001>

<llo_original>
// kernel: tpu_custom_call.1
$region0: #{tpu_custom_call.1}
  #allocation0 [shape = 'u32[]', space=smem, size = 0x4, offset = 0x4, fixed_abs, tag = 'smem constant byte address 0x4 - core index']
  #allocation1 [shape = 'u32[144,128]{1,0:T(1,128)}', space=vmem, size = 0x12000, scoped, tag = 'internal scratch']
  %s0 = inlined_call_operand.hbm [shape: f32[2,128], index: 0, kind: input, shape index: {}]
  %s1 = inlined_call_operand.hbm [shape: f32[1,128], index: 1, kind: output, shape index: {}]
  %s2 = sld [smem:[#allocation0]]
  $region18: #{tpu_custom_call.1} parent=0
    _
  %s4 = ssub.s32 1, %s2
  %s5 = scalar_select 0, %s4, %s2
  $region1: #{tpu_custom_call.1} parent=0
    #allocation2 [shape = 'u8[1024]{0}', space=vmem, size = 0x400, scoped, tag = 'input window, operand 0, single buffered']
    #allocation3 [shape = 's32[1]{0}', space=sflag, size = 0x4, scoped, tag = 'scoped memory for tpu_custom_call.1']
    #allocation4 [shape = 's32[1]{0}', space=sflag, size = 0x4, scoped, tag = 'scoped memory for tpu_custom_call.1']
    #allocation5 [shape = 'u8[512]{0}', space=vmem, size = 0x400, scoped, tag = 'output window, operand 0, single buffered']
    %6 = vsyncpa [#allocation3], 0
    %7 = vsyncpa [#allocation4], 0
    // Predicated region
    $region2: #{tpu_custom_call.1} parent=1 // pred_check
      _
    $region3: #{tpu_custom_call.1} parent=1 // pred_check_branch
      %9 = sbr.rel (0) target = $region5
    $region4: #{tpu_custom_call.1} parent=1 // pred_region
      %s11 = ssub.s32 32, 32
      %12 = vsyncadd [#allocation3], %s11
      %s14 = sshll.u32 [#allocation2], 4
      %s15 = int_to_ptr.vmem [resolvable:$true] %s14
      %17 = dma.hbm_to_vmem [thread:$0]  %s0, 32, %s15, [#allocation3]
    $region5: #{tpu_custom_call.1} parent=1 // pred_fallthru
      _
    // Predicated region
    $region6: #{tpu_custom_call.1} parent=1 // pred_check
      _
    $region7: #{tpu_custom_call.1} parent=1 // pred_check_branch
      %19 = sbr.rel (0) target = $region9
    $region8: #{tpu_custom_call.1} parent=1 // pred_region
      %20 = dma.done [#allocation3], 32
    $region9: #{tpu_custom_call.1} parent=1 // pred_fallthru
      _
    %v21 = vld [vmem:[#allocation2] sm:$0x3]
    %22 = vst [vmem:[#allocation5 - $0x1] sm:$0x2] %v21
    // Predicated region
    $region10: #{tpu_custom_call.1} parent=1 // pred_check
      _
    $region11: #{tpu_custom_call.1} parent=1 // pred_check_branch
      %24 = sbr.rel (0) target = $region13
    $region12: #{tpu_custom_call.1} parent=1 // pred_region
      %s26 = ssub.s32 16, 16
      %27 = vsyncadd [#allocation4], %s26
      %s29 = sshll.u32 [#allocation5], 4
      %s30 = int_to_ptr.vmem [resolvable:$true] %s29
      %32 = dma.vmem_to_hbm [thread:$0]  %s30, 16, %s1, [#allocation4]
    $region13: #{tpu_custom_call.1} parent=1 // pred_fallthru
      _
    // Predicated region
    $region14: #{tpu_custom_call.1} parent=1 // pred_check
      _
    $region15: #{tpu_custom_call.1} parent=1 // pred_check_branch
      %34 = sbr.rel (0) target = $region17
    $region16: #{tpu_custom_call.1} parent=1 // pred_region
      %35 = dma.done [#allocation4], 16
    $region17: #{tpu_custom_call.1} parent=1 // pred_fallthru
      _
    %36 = vsyncpa [#allocation3], 1
    %37 = vsyncpa [#allocation4], 1

</llo_original>
